<compile_context>
chip_gen: v7x
topology: tpu7x:2x2x1
jax: 0.10.0
libtpu: 0.0.40
codegen_flags: <defaults>
</compile_context>

<pallas_src>
import functools

import jax
import jax.numpy as jnp
from jax.experimental import pallas as pl
from jax.experimental.pallas import tpu as pltpu


SIGMA_DATA = 0.5  # EDM sigma_data


def _loss_kernel(C, HW, sc_ref, x_ref, n_ref, w_ref, b_ref, loss_ref):
    """Batch-blocked kernel.

    sc_ref  : VMEM (TB, 8) f32 scalar table per sample:
              [sigma, c_skip, g=c_out*c_in, c_out, w_pre=w/(C*HW), 0, 0, 0]
    x_ref   : VMEM (TB, C*HW) target latent rows (the `input` of the module)
    n_ref   : VMEM (TB, C*HW) gaussian noise rows
    w_ref   : SMEM (C*C,)     1x1-conv weight of the synthetic network (row-major)
    b_ref   : SMEM (C,)       1x1-conv bias
    loss_ref: VMEM (TB, 1)    per-sample weighted L2 loss (output block)
    """
    x = x_ref[...].astype(jnp.float32)       # (TB, C*HW)
    noise = n_ref[...].astype(jnp.float32)   # (TB, C*HW)

    sc = sc_ref[...]                         # (TB, 8)
    sigma = sc[:, 0:1]                       # (TB, 1) broadcasts along lanes
    c_skip = sc[:, 1:2]
    g = sc[:, 2:3]                           # c_out * c_in folded together
    c_out = sc[:, 3:4]
    w_pre = sc[:, 4:5]                       # loss_weighting(sigma) / (C*HW)

    # get_noised_input: input + noise * sigmas_bc
    noised = x + noise * sigma               # (TB, C*HW)

    # denoiser(network, noised_input, sigma):
    #   D(x) = c_skip * x + c_out * (W @ (c_in * x) + b)
    #        = c_skip * x + g * (W @ x) + c_out * b
    # Channel mix via unrolled VPU broadcast-FMAs over lane chunks of width HW.
    acc = None
    for o in range(C):
        conv_o = w_ref[o * C + 0] * noised[:, 0:HW]
        for c in range(1, C):
            conv_o = conv_o + w_ref[o * C + c] * noised[:, c * HW:(c + 1) * HW]
        noised_o = noised[:, o * HW:(o + 1) * HW]
        x_o = x[:, o * HW:(o + 1) * HW]
        # predict = model_output (replace_cond_frames == False)
        diff_o = c_skip * noised_o + g * conv_o + c_out * b_ref[o] - x_o
        part = jnp.sum(diff_o * diff_o, axis=-1, keepdims=True)  # (TB, 1)
        acc = part if acc is None else acc + part

    # get_loss (l2, no additional loss): w * mean((predict - target)^2)
    loss_ref[...] = w_pre * acc


def _pick_batch_block(B, C, HW, itemsize):
    """Largest batch block that satisfies the (8,128) sublane rule, fits a
    conservative VMEM budget (v7x-safe), and leaves >= 2 grid steps when
    possible (so both v7x TensorCores get work under 'parallel')."""
    budget = 24 * 1024 * 1024                       # headroom under scoped VMEM
    per_sample = 2 * C * HW * itemsize * 2          # x + noise, double-buffered
    cap = max(1, budget // per_sample)
    valid = [tb for tb in range(1, B + 1)
             if B % tb == 0 and (tb % 8 == 0 or tb == B) and tb <= cap]
    multi = [tb for tb in valid if B // tb >= 2]
    if multi:
        return max(multi)
    if valid:
        return max(valid)
    return B  # fallback: one block covering the whole batch (always legal)


def diffusion_loss_re(x_nchw, noise_nchw, sigmas, w_mat, bias):
    """Returns (combined_loss, latent_loss, zero_loss), each of shape (B,)."""
    B, C, H, W = x_nchw.shape
    HW = H * W
    CHW = C * HW

    # Row-per-sample layout; keep the caller's dtype (bf16 streams at half BW),
    # the kernel casts to f32 internally.
    x = x_nchw.reshape(B, CHW)
    n = noise_nchw.reshape(B, CHW)

    # Scalar glue: EDM preconditioning coefficients + EDM loss weighting,
    # with c_in/c_out folded (g) and the mean divisor folded into w (w_pre).
    s = sigmas.astype(jnp.float32)
    s2 = s * s
    sd2 = jnp.float32(SIGMA_DATA ** 2)
    denom = s2 + sd2
    c_skip = sd2 / denom
    c_out = s * SIGMA_DATA / jnp.sqrt(denom)
    c_in = 1.0 / jnp.sqrt(denom)
    g = c_out * c_in
    w_loss = denom / (s2 * sd2)                     # loss_weighting(sigmas)
    w_pre = w_loss / jnp.float32(CHW)
    pad = jnp.zeros_like(s)
    scalar_tbl = jnp.stack(
        [s, c_skip, g, c_out, w_pre, pad, pad, pad], axis=1
    ).astype(jnp.float32)                            # (B, 8)

    w_flat = w_mat.reshape(C * C).astype(jnp.float32)
    b_flat = bias.reshape(C).astype(jnp.float32)

    TB = _pick_batch_block(B, C, HW, jnp.dtype(x.dtype).itemsize)
    grid = (B // TB,)

    itemsize = jnp.dtype(x.dtype).itemsize
    cost = pl.CostEstimate(
        flops=(2 * C + 10) * B * CHW,
        transcendentals=0,
        bytes_accessed=2 * B * CHW * itemsize + B * 8 * 4 + B * 4,
    )

    latent_loss_2d = pl.pallas_call(
        functools.partial(_loss_kernel, C, HW),
        out_shape=jax.ShapeDtypeStruct((B, 1), jnp.float32),
        grid_spec=pltpu.PrefetchScalarGridSpec(
            num_scalar_prefetch=0,
            grid=grid,
            in_specs=[
                pl.BlockSpec((TB, 8), lambda i: (i, 0)),       # scalar table
                pl.BlockSpec((TB, CHW), lambda i: (i, 0)),     # input rows
                pl.BlockSpec((TB, CHW), lambda i: (i, 0)),     # noise rows
                pl.BlockSpec(memory_space=pltpu.MemorySpace.SMEM),  # conv W
                pl.BlockSpec(memory_space=pltpu.MemorySpace.SMEM),  # conv b
            ],
            out_specs=pl.BlockSpec((TB, 1), lambda i: (i, 0)),
        ),
        compiler_params=pltpu.CompilerParams(
            dimension_semantics=("parallel",)),
        cost_estimate=cost,
    )(scalar_tbl, x, n, w_flat, b_flat)

    latent_loss = latent_loss_2d.reshape(B)
    combined_loss = latent_loss
    zero_loss = jnp.zeros_like(latent_loss)
    return combined_loss, latent_loss, zero_loss


def _reference(x_nchw, noise_nchw, sigmas, w_mat, bias):
    """Pure-JAX reference of the same forward semantics."""
    B, C, H, W = x_nchw.shape
    xf = x_nchw.astype(jnp.float32)
    nf = noise_nchw.astype(jnp.float32)
    sig = sigmas.reshape(B, 1, 1, 1)
    s2 = sigmas ** 2
    sd2 = SIGMA_DATA ** 2
    denom = s2 + sd2
    c_skip = (sd2 / denom).reshape(B, 1, 1, 1)
    c_out = (sigmas * SIGMA_DATA / jnp.sqrt(denom)).reshape(B, 1, 1, 1)
    c_in = (1.0 / jnp.sqrt(denom)).reshape(B, 1, 1, 1)
    w_loss = (denom / (s2 * sd2)).reshape(B, 1, 1, 1)

    noised = xf + nf * sig
    f_x = jnp.einsum("oc,bchw->bohw", w_mat, noised * c_in) + bias.reshape(1, C, 1, 1)
    model_output = c_skip * noised + c_out * f_x
    loss = jnp.mean((w_loss * (model_output - xf) ** 2).reshape(B, -1), axis=1)
    return loss


if __name__ == "__main__":
    key = jax.random.PRNGKey(0)
    k_x, k_n, k_s, k_w = jax.random.split(key, 4)

    B, C, H, W = 16, 4, 16, 16
    x = jax.random.normal(k_x, (B, C, H, W), dtype=jnp.float32)       # input latent
    noise = jax.random.normal(k_n, (B, C, H, W), dtype=jnp.float32)   # randn_like(input)

    # sigma_sampler: EDM lognormal sampling, P_mean=-1.2, P_std=1.2
    log_sigma = -1.2 + 1.2 * jax.random.normal(k_s, (B,), dtype=jnp.float32)
    sigmas = jnp.exp(log_sigma)

    # Deterministic synthetic network parameters (1x1 conv over channels).
    w_mat = 0.1 * jax.random.normal(k_w, (C, C), dtype=jnp.float32)
    bias = jnp.zeros((C, 1), dtype=jnp.float32)

    combined, latent, zero = jax.block_until_ready(
        diffusion_loss_re(x, noise, sigmas, w_mat, bias))

    ref = _reference(x, noise, sigmas, w_mat, bias)
    assert jnp.allclose(latent, ref, rtol=2e-4, atol=1e-5), (latent, ref)
    assert combined.shape == (B,) and latent.shape == (B,) and zero.shape == (B,)
    assert jnp.allclose(combined, latent) and jnp.all(zero == 0.0)

    print("KERNEL_OK")
</pallas_src>

<mosaic_0001>
module attributes {stable_mosaic.version = 11 : i64} {
  func.func @_loss_kernel(%arg0: i32, %arg1: memref<8x8xf32, #tpu.memory_space<vmem>>, %arg2: memref<8x1024xf32, #tpu.memory_space<vmem>>, %arg3: memref<8x1024xf32, #tpu.memory_space<vmem>>, %arg4: memref<16xf32, #tpu.memory_space<smem>>, %arg5: memref<4xf32, #tpu.memory_space<smem>>, %arg6: memref<8x1xf32, #tpu.memory_space<vmem>>) attributes {dimension_semantics = [#tpu.dimension_semantics<parallel>], iteration_bounds = array<i64: 2>, scalar_prefetch = 0 : i64, scratch_operands = 0 : i64, tpu.core_type = #tpu.core_type<tc>, window_params = [{transform_indices = @transform_0, window_bounds = array<i64: 8, 8>}, {transform_indices = @transform_1, window_bounds = array<i64: 8, 1024>}, {transform_indices = @transform_2, window_bounds = array<i64: 8, 1024>}, {transform_indices = @transform_3, window_bounds = array<i64: 16>}, {transform_indices = @transform_4, window_bounds = array<i64: 4>}, {transform_indices = @transform_5, window_bounds = array<i64: 8, 1>}]} {
    %c0 = arith.constant 0 : index
    %c0_0 = arith.constant 0 : index
    %0 = vector.load %arg2[%c0, %c0_0] : memref<8x1024xf32, #tpu.memory_space<vmem>>, vector<8x1024xf32>
    %c0_1 = arith.constant 0 : index
    %c0_2 = arith.constant 0 : index
    %1 = vector.load %arg3[%c0_1, %c0_2] : memref<8x1024xf32, #tpu.memory_space<vmem>>, vector<8x1024xf32>
    %c0_3 = arith.constant 0 : index
    %c0_4 = arith.constant 0 : index
    %2 = vector.load %arg1[%c0_3, %c0_4] : memref<8x8xf32, #tpu.memory_space<vmem>>, vector<8x8xf32>
    %3 = vector.extract_strided_slice %2 {offsets = [0, 0], sizes = [8, 1], strides = [1, 1]} : vector<8x8xf32> to vector<8x1xf32>
    %4 = vector.extract_strided_slice %2 {offsets = [0, 1], sizes = [8, 1], strides = [1, 1]} : vector<8x8xf32> to vector<8x1xf32>
    %5 = vector.extract_strided_slice %2 {offsets = [0, 2], sizes = [8, 1], strides = [1, 1]} : vector<8x8xf32> to vector<8x1xf32>
    %6 = vector.extract_strided_slice %2 {offsets = [0, 3], sizes = [8, 1], strides = [1, 1]} : vector<8x8xf32> to vector<8x1xf32>
    %7 = vector.extract_strided_slice %2 {offsets = [0, 4], sizes = [8, 1], strides = [1, 1]} : vector<8x8xf32> to vector<8x1xf32>
    %8 = vector.broadcast %3 : vector<8x1xf32> to vector<8x1024xf32>
    %9 = arith.mulf %1, %8 : vector<8x1024xf32>
    %10 = arith.addf %0, %9 : vector<8x1024xf32>
    %c0_5 = arith.constant 0 : index
    %11 = memref.load %arg4[%c0_5] : memref<16xf32, #tpu.memory_space<smem>>
    %12 = vector.extract_strided_slice %10 {offsets = [0, 0], sizes = [8, 256], strides = [1, 1]} : vector<8x1024xf32> to vector<8x256xf32>
    %13 = vector.broadcast %11 : f32 to vector<8x256xf32>
    %14 = arith.mulf %13, %12 : vector<8x256xf32>
    %c1 = arith.constant 1 : index
    %15 = memref.load %arg4[%c1] : memref<16xf32, #tpu.memory_space<smem>>
    %16 = vector.extract_strided_slice %10 {offsets = [0, 256], sizes = [8, 256], strides = [1, 1]} : vector<8x1024xf32> to vector<8x256xf32>
    %17 = vector.broadcast %15 : f32 to vector<8x256xf32>
    %18 = arith.mulf %17, %16 : vector<8x256xf32>
    %19 = arith.addf %14, %18 : vector<8x256xf32>
    %c2 = arith.constant 2 : index
    %20 = memref.load %arg4[%c2] : memref<16xf32, #tpu.memory_space<smem>>
    %21 = vector.extract_strided_slice %10 {offsets = [0, 512], sizes = [8, 256], strides = [1, 1]} : vector<8x1024xf32> to vector<8x256xf32>
    %22 = vector.broadcast %20 : f32 to vector<8x256xf32>
    %23 = arith.mulf %22, %21 : vector<8x256xf32>
    %24 = arith.addf %19, %23 : vector<8x256xf32>
    %c3 = arith.constant 3 : index
    %25 = memref.load %arg4[%c3] : memref<16xf32, #tpu.memory_space<smem>>
    %26 = vector.extract_strided_slice %10 {offsets = [0, 768], sizes = [8, 256], strides = [1, 1]} : vector<8x1024xf32> to vector<8x256xf32>
    %27 = vector.broadcast %25 : f32 to vector<8x256xf32>
    %28 = arith.mulf %27, %26 : vector<8x256xf32>
    %29 = arith.addf %24, %28 : vector<8x256xf32>
    %30 = vector.extract_strided_slice %10 {offsets = [0, 0], sizes = [8, 256], strides = [1, 1]} : vector<8x1024xf32> to vector<8x256xf32>
    %31 = vector.extract_strided_slice %0 {offsets = [0, 0], sizes = [8, 256], strides = [1, 1]} : vector<8x1024xf32> to vector<8x256xf32>
    %32 = vector.broadcast %4 : vector<8x1xf32> to vector<8x256xf32>
    %33 = arith.mulf %32, %30 : vector<8x256xf32>
    %34 = vector.broadcast %5 : vector<8x1xf32> to vector<8x256xf32>
    %35 = arith.mulf %34, %29 : vector<8x256xf32>
    %36 = arith.addf %33, %35 : vector<8x256xf32>
    %c0_6 = arith.constant 0 : index
    %37 = memref.load %arg5[%c0_6] : memref<4xf32, #tpu.memory_space<smem>>
    %38 = vector.broadcast %37 : f32 to vector<8x1xf32>
    %39 = arith.mulf %6, %38 : vector<8x1xf32>
    %40 = vector.broadcast %39 : vector<8x1xf32> to vector<8x256xf32>
    %41 = arith.addf %36, %40 : vector<8x256xf32>
    %42 = arith.subf %41, %31 : vector<8x256xf32>
    %43 = arith.mulf %42, %42 : vector<8x256xf32>
    %cst = arith.constant dense<0.000000e+00> : vector<8xf32>
    %44 = vector.multi_reduction <add>, %43, %cst [1] : vector<8x256xf32> to vector<8xf32>
    %45 = vector.shape_cast %44 : vector<8xf32> to vector<8x1xf32>
    %c4 = arith.constant 4 : index
    %46 = memref.load %arg4[%c4] : memref<16xf32, #tpu.memory_space<smem>>
    %47 = vector.extract_strided_slice %10 {offsets = [0, 0], sizes = [8, 256], strides = [1, 1]} : vector<8x1024xf32> to vector<8x256xf32>
    %48 = vector.broadcast %46 : f32 to vector<8x256xf32>
    %49 = arith.mulf %48, %47 : vector<8x256xf32>
    %c5 = arith.constant 5 : index
    %50 = memref.load %arg4[%c5] : memref<16xf32, #tpu.memory_space<smem>>
    %51 = vector.extract_strided_slice %10 {offsets = [0, 256], sizes = [8, 256], strides = [1, 1]} : vector<8x1024xf32> to vector<8x256xf32>
    %52 = vector.broadcast %50 : f32 to vector<8x256xf32>
    %53 = arith.mulf %52, %51 : vector<8x256xf32>
    %54 = arith.addf %49, %53 : vector<8x256xf32>
    %c6 = arith.constant 6 : index
    %55 = memref.load %arg4[%c6] : memref<16xf32, #tpu.memory_space<smem>>
    %56 = vector.extract_strided_slice %10 {offsets = [0, 512], sizes = [8, 256], strides = [1, 1]} : vector<8x1024xf32> to vector<8x256xf32>
    %57 = vector.broadcast %55 : f32 to vector<8x256xf32>
    %58 = arith.mulf %57, %56 : vector<8x256xf32>
    %59 = arith.addf %54, %58 : vector<8x256xf32>
    %c7 = arith.constant 7 : index
    %60 = memref.load %arg4[%c7] : memref<16xf32, #tpu.memory_space<smem>>
    %61 = vector.extract_strided_slice %10 {offsets = [0, 768], sizes = [8, 256], strides = [1, 1]} : vector<8x1024xf32> to vector<8x256xf32>
    %62 = vector.broadcast %60 : f32 to vector<8x256xf32>
    %63 = arith.mulf %62, %61 : vector<8x256xf32>
    %64 = arith.addf %59, %63 : vector<8x256xf32>
    %65 = vector.extract_strided_slice %10 {offsets = [0, 256], sizes = [8, 256], strides = [1, 1]} : vector<8x1024xf32> to vector<8x256xf32>
    %66 = vector.extract_strided_slice %0 {offsets = [0, 256], sizes = [8, 256], strides = [1, 1]} : vector<8x1024xf32> to vector<8x256xf32>
    %67 = vector.broadcast %4 : vector<8x1xf32> to vector<8x256xf32>
    %68 = arith.mulf %67, %65 : vector<8x256xf32>
    %69 = vector.broadcast %5 : vector<8x1xf32> to vector<8x256xf32>
    %70 = arith.mulf %69, %64 : vector<8x256xf32>
    %71 = arith.addf %68, %70 : vector<8x256xf32>
    %c1_7 = arith.constant 1 : index
    %72 = memref.load %arg5[%c1_7] : memref<4xf32, #tpu.memory_space<smem>>
    %73 = vector.broadcast %72 : f32 to vector<8x1xf32>
    %74 = arith.mulf %6, %73 : vector<8x1xf32>
    %75 = vector.broadcast %74 : vector<8x1xf32> to vector<8x256xf32>
    %76 = arith.addf %71, %75 : vector<8x256xf32>
    %77 = arith.subf %76, %66 : vector<8x256xf32>
    %78 = arith.mulf %77, %77 : vector<8x256xf32>
    %cst_8 = arith.constant dense<0.000000e+00> : vector<8xf32>
    %79 = vector.multi_reduction <add>, %78, %cst_8 [1] : vector<8x256xf32> to vector<8xf32>
    %80 = vector.shape_cast %79 : vector<8xf32> to vector<8x1xf32>
    %81 = arith.addf %45, %80 : vector<8x1xf32>
    %c8 = arith.constant 8 : index
    %82 = memref.load %arg4[%c8] : memref<16xf32, #tpu.memory_space<smem>>
    %83 = vector.extract_strided_slice %10 {offsets = [0, 0], sizes = [8, 256], strides = [1, 1]} : vector<8x1024xf32> to vector<8x256xf32>
    %84 = vector.broadcast %82 : f32 to vector<8x256xf32>
    %85 = arith.mulf %84, %83 : vector<8x256xf32>
    %c9 = arith.constant 9 : index
    %86 = memref.load %arg4[%c9] : memref<16xf32, #tpu.memory_space<smem>>
    %87 = vector.extract_strided_slice %10 {offsets = [0, 256], sizes = [8, 256], strides = [1, 1]} : vector<8x1024xf32> to vector<8x256xf32>
    %88 = vector.broadcast %86 : f32 to vector<8x256xf32>
    %89 = arith.mulf %88, %87 : vector<8x256xf32>
    %90 = arith.addf %85, %89 : vector<8x256xf32>
    %c10 = arith.constant 10 : index
    %91 = memref.load %arg4[%c10] : memref<16xf32, #tpu.memory_space<smem>>
    %92 = vector.extract_strided_slice %10 {offsets = [0, 512], sizes = [8, 256], strides = [1, 1]} : vector<8x1024xf32> to vector<8x256xf32>
    %93 = vector.broadcast %91 : f32 to vector<8x256xf32>
    %94 = arith.mulf %93, %92 : vector<8x256xf32>
    %95 = arith.addf %90, %94 : vector<8x256xf32>
    %c11 = arith.constant 11 : index
    %96 = memref.load %arg4[%c11] : memref<16xf32, #tpu.memory_space<smem>>
    %97 = vector.extract_strided_slice %10 {offsets = [0, 768], sizes = [8, 256], strides = [1, 1]} : vector<8x1024xf32> to vector<8x256xf32>
    %98 = vector.broadcast %96 : f32 to vector<8x256xf32>
    %99 = arith.mulf %98, %97 : vector<8x256xf32>
    %100 = arith.addf %95, %99 : vector<8x256xf32>
    %101 = vector.extract_strided_slice %10 {offsets = [0, 512], sizes = [8, 256], strides = [1, 1]} : vector<8x1024xf32> to vector<8x256xf32>
    %102 = vector.extract_strided_slice %0 {offsets = [0, 512], sizes = [8, 256], strides = [1, 1]} : vector<8x1024xf32> to vector<8x256xf32>
    %103 = vector.broadcast %4 : vector<8x1xf32> to vector<8x256xf32>
    %104 = arith.mulf %103, %101 : vector<8x256xf32>
    %105 = vector.broadcast %5 : vector<8x1xf32> to vector<8x256xf32>
    %106 = arith.mulf %105, %100 : vector<8x256xf32>
    %107 = arith.addf %104, %106 : vector<8x256xf32>
    %c2_9 = arith.constant 2 : index
    %108 = memref.load %arg5[%c2_9] : memref<4xf32, #tpu.memory_space<smem>>
    %109 = vector.broadcast %108 : f32 to vector<8x1xf32>
    %110 = arith.mulf %6, %109 : vector<8x1xf32>
    %111 = vector.broadcast %110 : vector<8x1xf32> to vector<8x256xf32>
    %112 = arith.addf %107, %111 : vector<8x256xf32>
    %113 = arith.subf %112, %102 : vector<8x256xf32>
    %114 = arith.mulf %113, %113 : vector<8x256xf32>
    %cst_10 = arith.constant dense<0.000000e+00> : vector<8xf32>
    %115 = vector.multi_reduction <add>, %114, %cst_10 [1] : vector<8x256xf32> to vector<8xf32>
    %116 = vector.shape_cast %115 : vector<8xf32> to vector<8x1xf32>
    %117 = arith.addf %81, %116 : vector<8x1xf32>
    %c12 = arith.constant 12 : index
    %118 = memref.load %arg4[%c12] : memref<16xf32, #tpu.memory_space<smem>>
    %119 = vector.extract_strided_slice %10 {offsets = [0, 0], sizes = [8, 256], strides = [1, 1]} : vector<8x1024xf32> to vector<8x256xf32>
    %120 = vector.broadcast %118 : f32 to vector<8x256xf32>
    %121 = arith.mulf %120, %119 : vector<8x256xf32>
    %c13 = arith.constant 13 : index
    %122 = memref.load %arg4[%c13] : memref<16xf32, #tpu.memory_space<smem>>
    %123 = vector.extract_strided_slice %10 {offsets = [0, 256], sizes = [8, 256], strides = [1, 1]} : vector<8x1024xf32> to vector<8x256xf32>
    %124 = vector.broadcast %122 : f32 to vector<8x256xf32>
    %125 = arith.mulf %124, %123 : vector<8x256xf32>
    %126 = arith.addf %121, %125 : vector<8x256xf32>
    %c14 = arith.constant 14 : index
    %127 = memref.load %arg4[%c14] : memref<16xf32, #tpu.memory_space<smem>>
    %128 = vector.extract_strided_slice %10 {offsets = [0, 512], sizes = [8, 256], strides = [1, 1]} : vector<8x1024xf32> to vector<8x256xf32>
    %129 = vector.broadcast %127 : f32 to vector<8x256xf32>
    %130 = arith.mulf %129, %128 : vector<8x256xf32>
    %131 = arith.addf %126, %130 : vector<8x256xf32>
    %c15 = arith.constant 15 : index
    %132 = memref.load %arg4[%c15] : memref<16xf32, #tpu.memory_space<smem>>
    %133 = vector.extract_strided_slice %10 {offsets = [0, 768], sizes = [8, 256], strides = [1, 1]} : vector<8x1024xf32> to vector<8x256xf32>
    %134 = vector.broadcast %132 : f32 to vector<8x256xf32>
    %135 = arith.mulf %134, %133 : vector<8x256xf32>
    %136 = arith.addf %131, %135 : vector<8x256xf32>
    %137 = vector.extract_strided_slice %10 {offsets = [0, 768], sizes = [8, 256], strides = [1, 1]} : vector<8x1024xf32> to vector<8x256xf32>
    %138 = vector.extract_strided_slice %0 {offsets = [0, 768], sizes = [8, 256], strides = [1, 1]} : vector<8x1024xf32> to vector<8x256xf32>
    %139 = vector.broadcast %4 : vector<8x1xf32> to vector<8x256xf32>
    %140 = arith.mulf %139, %137 : vector<8x256xf32>
    %141 = vector.broadcast %5 : vector<8x1xf32> to vector<8x256xf32>
    %142 = arith.mulf %141, %136 : vector<8x256xf32>
    %143 = arith.addf %140, %142 : vector<8x256xf32>
    %c3_11 = arith.constant 3 : index
    %144 = memref.load %arg5[%c3_11] : memref<4xf32, #tpu.memory_space<smem>>
    %145 = vector.broadcast %144 : f32 to vector<8x1xf32>
    %146 = arith.mulf %6, %145 : vector<8x1xf32>
    %147 = vector.broadcast %146 : vector<8x1xf32> to vector<8x256xf32>
    %148 = arith.addf %143, %147 : vector<8x256xf32>
    %149 = arith.subf %148, %138 : vector<8x256xf32>
    %150 = arith.mulf %149, %149 : vector<8x256xf32>
    %cst_12 = arith.constant dense<0.000000e+00> : vector<8xf32>
    %151 = vector.multi_reduction <add>, %150, %cst_12 [1] : vector<8x256xf32> to vector<8xf32>
    %152 = vector.shape_cast %151 : vector<8xf32> to vector<8x1xf32>
    %153 = arith.addf %117, %152 : vector<8x1xf32>
    %154 = arith.mulf %7, %153 : vector<8x1xf32>
    %c0_13 = arith.constant 0 : index
    %c0_14 = arith.constant 0 : index
    %155 = vector.load %arg6[%c0_13, %c0_14] : memref<8x1xf32, #tpu.memory_space<vmem>>, vector<8x1xf32>
    tpu.vector_store %arg6[%c0_13, %c0_14], %154 {strides = array<i32>} : memref<8x1xf32, #tpu.memory_space<vmem>>, vector<8x1xf32>,
    return
  }
  func.func @transform_0(%arg0: i32) -> (i32, i32) {
    %c0_i32 = arith.constant 0 : i32
    %c0_i32_0 = arith.constant 0 : i32
    return %arg0, %c0_i32 : i32, i32
  }
  func.func @transform_1(%arg0: i32) -> (i32, i32) {
    %c0_i32 = arith.constant 0 : i32
    %c0_i32_0 = arith.constant 0 : i32
    return %arg0, %c0_i32 : i32, i32
  }
  func.func @transform_2(%arg0: i32) -> (i32, i32) {
    %c0_i32 = arith.constant 0 : i32
    %c0_i32_0 = arith.constant 0 : i32
    return %arg0, %c0_i32 : i32, i32
  }
  func.func @transform_3(%arg0: i32) -> i32 {
    %c0_i32 = arith.constant 0 : i32
    %c0_i32_0 = arith.constant 0 : i32
    return %c0_i32 : i32
  }
  func.func @transform_4(%arg0: i32) -> i32 {
    %c0_i32 = arith.constant 0 : i32
    %c0_i32_0 = arith.constant 0 : i32
    return %c0_i32 : i32
  }
  func.func @transform_5(%arg0: i32) -> (i32, i32) {
    %c0_i32 = arith.constant 0 : i32
    %c0_i32_0 = arith.constant 0 : i32
    return %arg0, %c0_i32 : i32, i32
  }
}

</mosaic_0001>

<llo_original>
// kernel: tpu_custom_call.1
$region0: #{tpu_custom_call.1}
  #allocation0 [shape = 'u32[]', space=smem, size = 0x4, offset = 0x4, fixed_abs, tag = 'smem constant byte address 0x4 - core index']
  #allocation1 [shape = 'u32[144,128]{1,0:T(1,128)}', space=vmem, size = 0x12000, scoped, tag = 'internal scratch']
  %s0 = inlined_call_operand.vmem [shape: f32[16,8], index: 0, kind: input, shape index: {}]
  %s1 = inlined_call_operand.hbm [shape: f32[16,1024], index: 1, kind: input, shape index: {}]
  %s2 = inlined_call_operand.hbm [shape: f32[16,1024], index: 2, kind: input, shape index: {}]
  %s3 = inlined_call_operand.vmem [shape: f32[16], index: 3, kind: input, shape index: {}]
  %s4 = inlined_call_operand.vmem [shape: f32[4], index: 4, kind: input, shape index: {}]
  %s5 = inlined_call_operand.vmem [shape: f32[16,1], index: 5, kind: output, shape index: {}]
  %s6 = sld [smem:[#allocation0]]
  $region69: #{tpu_custom_call.1} parent=0
    _
  %s8 = ssub.s32 1, %s6
  %s9 = scalar_select 0, %s8, %s6
  $region1: #{tpu_custom_call.1} parent=0
    #allocation2 [shape = 'u8[65536]{0}', space=vmem, size = 0x10000, scoped, tag = 'input window, operand 1']
    #allocation3 [shape = 's32[2]{0}', space=sflag, size = 0x8, scoped, tag = 'scoped memory for tpu_custom_call.1']
    #allocation4 [shape = 's32[2]{0}', space=sflag, size = 0x8, scoped, tag = 'scoped memory for tpu_custom_call.1']
    #allocation5 [shape = 'u8[65536]{0}', space=vmem, size = 0x10000, scoped, tag = 'input window, operand 2']
    #allocation6 [shape = 's32[2]{0}', space=sflag, size = 0x8, scoped, tag = 'scoped memory for tpu_custom_call.1']
    #allocation7 [shape = 'u8[512]{0}', space=smem, size = 0x200, scoped, tag = 'input window, operand 3, single buffered']
    #allocation8 [shape = 'u8[512]{0}', space=smem, size = 0x200, scoped, tag = 'input window, operand 4, single buffered']
    #allocation9 [shape = 's32[1]{0}', space=sflag, size = 0x4, scoped, tag = 'scoped memory for tpu_custom_call.1']
    %10 = vsyncpa [#allocation3], 0
    %s11 = scalar_lea.sflag [#allocation3], 1
    %12 = vsyncpa %s11, 0
    %13 = vsyncpa [#allocation6], 0
    %s14 = scalar_lea.sflag [#allocation6], 1
    %15 = vsyncpa %s14, 0
    %16 = vsyncpa [#allocation4], 0
    %17 = vsyncpa [#allocation9], 0
    loop: start=0, step=1, limit=4
    $region2: #{tpu_custom_call.1} parent=1 // loop_pre_header
      _
    $region3: #{tpu_custom_call.1} parent=1 // loop_header
      %s19 = sphi 0, %s23
      %p20 = scmp.ge.s32.totalorder %s19, 4
      %s29 = sphi 0, %s31
      %s32 = sphi 0, %s29
      %s33 = sphi 0, %s32
      %s49 = sphi 0, %s33
      %s55 = sphi 0, %s57
      %s58 = sphi 0, %s55
      %s59 = sphi 0, %s58
      %s75 = sphi 0, %s59
      %s81 = sphi 0, %s83
      %s84 = sphi 0, %s81
      %s85 = sphi 0, %s84
      %s101 = sphi 0, %s85
      %s105 = sphi 0, %s105
      %s107 = sphi 0, %s105
      %s108 = sphi 0, %s107
      %s122 = sphi 0, %s108
      %s126 = sphi 0, %s126
      %s128 = sphi 0, %s126
      %s129 = sphi 0, %s128
      %s143 = sphi 0, %s129
      %s149 = sphi 0, %s151
      %s152 = sphi 0, %s149
      %s153 = sphi 0, %s152
      %s169 = sphi 0, %s153
    $region4: #{tpu_custom_call.1} parent=1 // loop_header_branch
      %22 = sbr.rel (%p20) target = $region8
    $region5: #{tpu_custom_call.1} parent=1 // loop_body
      %s24 = ssub.s32 %s19, 1
      %s25 = ssub.s32 %s19, 2
      %s26 = sadd.s32 %s19, 1
      %s27 = ssub.s32 %s19, %s26
      %p28 = scmp.eq.s32.totalorder %s27, 0
      %s30 = sadd.s32 %s29, 1
      %s31 = scalar_select %p28, %s29, %s30
      %p34 = pneg %p28
      %p35 = scmp.eq.s32.totalorder %s19, 1
      %p36 = por %p34, %p35
      %p37 = scmp.ne.s32.totalorder %s29, %s32
      %p38 = scmp.eq.s32.totalorder %s19, 0
      %p39 = por %p37, %p38
      %p40 = scmp.ne.s32.totalorder %s29, %s32
      %p41 = scmp.eq.s32.totalorder %s24, 1
      %p42 = por %p40, %p41
      %p43 = scmp.ne.s32.totalorder %s32, %s33
      %p44 = scmp.eq.s32.totalorder %s24, 0
      %p45 = por %p43, %p44
      %p46 = scmp.ne.s32.totalorder %s32, %s33
      %p47 = scmp.eq.s32.totalorder %s25, 1
      %p48 = por %p46, %p47
      %p50 = scmp.ne.s32.totalorder %s33, %s49
      %p51 = scmp.eq.s32.totalorder %s25, 0
      %p52 = por %p50, %p51
      %s53 = ssub.s32 %s19, %s26
      %p54 = scmp.eq.s32.totalorder %s53, 0
      %s56 = sadd.s32 %s55, 1
      %s57 = scalar_select %p54, %s55, %s56
      %p60 = pneg %p54
      %p61 = scmp.eq.s32.totalorder %s19, 1
      %p62 = por %p60, %p61
      %p63 = scmp.ne.s32.totalorder %s55, %s58
      %p64 = scmp.eq.s32.totalorder %s19, 0
      %p65 = por %p63, %p64
      %p66 = scmp.ne.s32.totalorder %s55, %s58
      %p67 = scmp.eq.s32.totalorder %s24, 1
      %p68 = por %p66, %p67
      %p69 = scmp.ne.s32.totalorder %s58, %s59
      %p70 = scmp.eq.s32.totalorder %s24, 0
      %p71 = por %p69, %p70
      %p72 = scmp.ne.s32.totalorder %s58, %s59
      %p73 = scmp.eq.s32.totalorder %s25, 1
      %p74 = por %p72, %p73
      %p76 = scmp.ne.s32.totalorder %s59, %s75
      %p77 = scmp.eq.s32.totalorder %s25, 0
      %p78 = por %p76, %p77
      %s79 = ssub.s32 %s19, %s26
      %p80 = scmp.eq.s32.totalorder %s79, 0
      %s82 = sadd.s32 %s81, 1
      %s83 = scalar_select %p80, %s81, %s82
      %p86 = pneg %p80
      %p87 = scmp.eq.s32.totalorder %s19, 1
      %p88 = por %p86, %p87
      %p89 = scmp.ne.s32.totalorder %s81, %s84
      %p90 = scmp.eq.s32.totalorder %s19, 0
      %p91 = por %p89, %p90
      %p92 = scmp.ne.s32.totalorder %s81, %s84
      %p93 = scmp.eq.s32.totalorder %s24, 1
      %p94 = por %p92, %p93
      %p95 = scmp.ne.s32.totalorder %s84, %s85
      %p96 = scmp.eq.s32.totalorder %s24, 0
      %p97 = por %p95, %p96
      %p98 = scmp.ne.s32.totalorder %s84, %s85
      %p99 = scmp.eq.s32.totalorder %s25, 1
      %p100 = por %p98, %p99
      %p102 = scmp.ne.s32.totalorder %s85, %s101
      %p103 = scmp.eq.s32.totalorder %s25, 0
      %p104 = por %p102, %p103
      %s106 = sadd.s32 %s105, 1
      %p109 = scmp.eq.s32.totalorder %s19, 1
      %p110 = scmp.ne.s32.totalorder %s105, %s107
      %p111 = scmp.eq.s32.totalorder %s19, 0
      %p112 = por %p110, %p111
      %p113 = scmp.ne.s32.totalorder %s105, %s107
      %p114 = scmp.eq.s32.totalorder %s24, 1
      %p115 = por %p113, %p114
      %p116 = scmp.ne.s32.totalorder %s107, %s108
      %p117 = scmp.eq.s32.totalorder %s24, 0
      %p118 = por %p116, %p117
      %p119 = scmp.ne.s32.totalorder %s107, %s108
      %p120 = scmp.eq.s32.totalorder %s25, 1
      %p121 = por %p119, %p120
      %p123 = scmp.ne.s32.totalorder %s108, %s122
      %p124 = scmp.eq.s32.totalorder %s25, 0
      %p125 = por %p123, %p124
      %s127 = sadd.s32 %s126, 1
      %p130 = scmp.eq.s32.totalorder %s19, 1
      %p131 = scmp.ne.s32.totalorder %s126, %s128
      %p132 = scmp.eq.s32.totalorder %s19, 0
      %p133 = por %p131, %p132
      %p134 = scmp.ne.s32.totalorder %s126, %s128
      %p135 = scmp.eq.s32.totalorder %s24, 1
      %p136 = por %p134, %p135
      %p137 = scmp.ne.s32.totalorder %s128, %s129
      %p138 = scmp.eq.s32.totalorder %s24, 0
      %p139 = por %p137, %p138
      %p140 = scmp.ne.s32.totalorder %s128, %s129
      %p141 = scmp.eq.s32.totalorder %s25, 1
      %p142 = por %p140, %p141
      %p144 = scmp.ne.s32.totalorder %s129, %s143
      %p145 = scmp.eq.s32.totalorder %s25, 0
      %p146 = por %p144, %p145
      %s147 = ssub.s32 %s19, %s26
      %p148 = scmp.eq.s32.totalorder %s147, 0
      %s150 = sadd.s32 %s149, 1
      %s151 = scalar_select %p148, %s149, %s150
      %p154 = pneg %p148
      %p155 = scmp.eq.s32.totalorder %s19, 1
      %p156 = por %p154, %p155
      %p157 = scmp.ne.s32.totalorder %s149, %s152
      %p158 = scmp.eq.s32.totalorder %s19, 0
      %p159 = por %p157, %p158
      %p160 = scmp.ne.s32.totalorder %s149, %s152
      %p161 = scmp.eq.s32.totalorder %s24, 1
      %p162 = por %p160, %p161
      %p163 = scmp.ne.s32.totalorder %s152, %s153
      %p164 = scmp.eq.s32.totalorder %s24, 0
      %p165 = por %p163, %p164
      %p166 = scmp.ne.s32.totalorder %s152, %s153
      %p167 = scmp.eq.s32.totalorder %s25, 1
      %p168 = por %p166, %p167
      %p170 = scmp.ne.s32.totalorder %s153, %s169
      %p171 = scmp.eq.s32.totalorder %s25, 0
      %p172 = por %p170, %p171
      %p173 = scmp.le.s32.totalorder 1, %s19
      %p174 = scmp.lt.s32.totalorder %s19, 3
      %p175 = pnand %p173, %p174
      %p176 = pneg %p175
      // Predicated region
      $region9: #{tpu_custom_call.1} parent=5 // pred_check
        _
      $region10: #{tpu_custom_call.1} parent=5 // pred_check_branch
        %178 = sbr.rel (%p175) target = $region12
      $region11: #{tpu_custom_call.1} parent=5 // pred_region
        %s179 = ssub.s32 %s19, 1
        // Predicated region
        $region13: #{tpu_custom_call.1} parent=11 // pred_check
          %p180 = pneg %p118
        $region14: #{tpu_custom_call.1} parent=11 // pred_check_branch
          %182 = sbr.rel (%p180) target = $region16
        $region15: #{tpu_custom_call.1} parent=11 // pred_region
          %s184 = ssub.s32 16, 16
          %185 = vsyncadd [#allocation4], %s184
          %s187 = sshll.u32 %s3, 4
          %s188 = int_to_ptr.vmem [resolvable:$true] %s187
          %190 = dma.vmem_to_smem %s188, 16, [#allocation7], [#allocation4]
        $region16: #{tpu_custom_call.1} parent=11 // pred_fallthru
          _
        // Predicated region
        $region17: #{tpu_custom_call.1} parent=11 // pred_check
          %p191 = pneg %p139
        $region18: #{tpu_custom_call.1} parent=11 // pred_check_branch
          %193 = sbr.rel (%p191) target = $region20
        $region19: #{tpu_custom_call.1} parent=11 // pred_region
          %s195 = ssub.s32 16, 16
          %196 = vsyncadd [#allocation9], %s195
          %s198 = sshll.u32 %s4, 4
          %s199 = int_to_ptr.vmem [resolvable:$true] %s198
          %201 = dma.vmem_to_smem %s199, 16, [#allocation8], [#allocation9]
        $region20: #{tpu_custom_call.1} parent=11 // pred_fallthru
          _
      $region12: #{tpu_custom_call.1} parent=5 // pred_fallthru
        _
      %p202 = scmp.lt.s32.totalorder %s19, 2
      // Predicated region
      $region21: #{tpu_custom_call.1} parent=5 // pred_check
        %p203 = pneg %p202
      $region22: #{tpu_custom_call.1} parent=5 // pred_check_branch
        %205 = sbr.rel (%p203) target = $region24
      $region23: #{tpu_custom_call.1} parent=5 // pred_region
        // Predicated region
        $region25: #{tpu_custom_call.1} parent=23 // pred_check
          %p206 = pneg %p39
        $region26: #{tpu_custom_call.1} parent=23 // pred_check_branch
          %208 = sbr.rel (%p206) target = $region28
        $region27: #{tpu_custom_call.1} parent=23 // pred_region
          %p209 = scmp.lt.s32.totalorder %s19, 1
          %s210 = scalar_select %p209, %s19, 1
          %s211 = smul.addr %s210, 8
          %s212 = scalar_lea.vmem %s0, %s211
        $region28: #{tpu_custom_call.1} parent=23 // pred_fallthru
          _
        // Predicated region
        $region29: #{tpu_custom_call.1} parent=23 // pred_check
          %p213 = pneg %p65
        $region30: #{tpu_custom_call.1} parent=23 // pred_check_branch
          %215 = sbr.rel (%p213) target = $region32
        $region31: #{tpu_custom_call.1} parent=23 // pred_region
          %s216 = sand.u32 %s55, 1
          %s217 = scalar_lea.sflag [#allocation3], %s216
          %s218 = sand.u32 %s55, 1
          %s219 = smul.addr %s218, 64
          %s220 = scalar_lea.vmem [#allocation2], %s219
          %s222 = ssub.s32 1024, 1024
          %223 = vsyncadd %s217, %s222
          %s224 = smul.addr %s19, 8
          %s225 = smul.addr %s224, 128
          %s226 = scalar_lea.hbm %s1, %s225
          %s228 = sshll.u32 %s220, 4
          %s229 = int_to_ptr.vmem [resolvable:$true] %s228
          %231 = dma.hbm_to_vmem [thread:$0]  %s226, 1024, %s229, %s217
        $region32: #{tpu_custom_call.1} parent=23 // pred_fallthru
          _
        // Predicated region
        $region33: #{tpu_custom_call.1} parent=23 // pred_check
          %p232 = pneg %p91
        $region34: #{tpu_custom_call.1} parent=23 // pred_check_branch
          %234 = sbr.rel (%p232) target = $region36
        $region35: #{tpu_custom_call.1} parent=23 // pred_region
          %s235 = sand.u32 %s81, 1
          %s236 = scalar_lea.sflag [#allocation6], %s235
          %s237 = sand.u32 %s81, 1
          %s238 = smul.addr %s237, 64
          %s239 = scalar_lea.vmem [#allocation5], %s238
          %s241 = ssub.s32 1024, 1024
          %242 = vsyncadd %s236, %s241
          %s243 = smul.addr %s19, 8
          %s244 = smul.addr %s243, 128
          %s245 = scalar_lea.hbm %s2, %s244
          %s247 = sshll.u32 %s239, 4
          %s248 = int_to_ptr.vmem [resolvable:$true] %s247
          %250 = dma.hbm_to_vmem [thread:$0]  %s245, 1024, %s248, %s236
        $region36: #{tpu_custom_call.1} parent=23 // pred_fallthru
          _
      $region24: #{tpu_custom_call.1} parent=5 // pred_fallthru
        _
      %p251 = scmp.le.s32.totalorder 1, %s19
      %p252 = scmp.lt.s32.totalorder %s19, 3
      %p253 = pnand %p251, %p252
      %p254 = pneg %p253
      // Predicated region
      $region37: #{tpu_custom_call.1} parent=5 // pred_check
        _
      $region38: #{tpu_custom_call.1} parent=5 // pred_check_branch
        %256 = sbr.rel (%p253) target = $region40
      $region39: #{tpu_custom_call.1} parent=5 // pred_region
        %s257 = ssub.s32 %s19, 1
        %s258 = sand.u32 %s58, 1
        %s259 = scalar_lea.sflag [#allocation3], %s258
        %s260 = sand.u32 %s58, 1
        %s261 = smul.addr %s260, 64
        %s262 = scalar_lea.vmem [#allocation2], %s261
        // Predicated region
        $region41: #{tpu_custom_call.1} parent=39 // pred_check
          %p263 = pneg %p71
        $region42: #{tpu_custom_call.1} parent=39 // pred_check_branch
          %265 = sbr.rel (%p263) target = $region44
        $region43: #{tpu_custom_call.1} parent=39 // pred_region
          %266 = dma.done %s259, 1024
        $region44: #{tpu_custom_call.1} parent=39 // pred_fallthru
          _
        %s267 = sand.u32 %s84, 1
        %s268 = scalar_lea.sflag [#allocation6], %s267
        %s269 = sand.u32 %s84, 1
        %s270 = smul.addr %s269, 64
        %s271 = scalar_lea.vmem [#allocation5], %s270
        // Predicated region
        $region45: #{tpu_custom_call.1} parent=39 // pred_check
          %p272 = pneg %p97
        $region46: #{tpu_custom_call.1} parent=39 // pred_check_branch
          %274 = sbr.rel (%p272) target = $region48
        $region47: #{tpu_custom_call.1} parent=39 // pred_region
          %275 = dma.done %s268, 1024
        $region48: #{tpu_custom_call.1} parent=39 // pred_fallthru
          _
        // Predicated region
        $region49: #{tpu_custom_call.1} parent=39 // pred_check
          %p276 = pneg %p118
        $region50: #{tpu_custom_call.1} parent=39 // pred_check_branch
          %278 = sbr.rel (%p276) target = $region52
        $region51: #{tpu_custom_call.1} parent=39 // pred_region
          %279 = dma.done [#allocation4], 16
        $region52: #{tpu_custom_call.1} parent=39 // pred_fallthru
          _
        // Predicated region
        $region53: #{tpu_custom_call.1} parent=39 // pred_check
          %p280 = pneg %p139
        $region54: #{tpu_custom_call.1} parent=39 // pred_check_branch
          %282 = sbr.rel (%p280) target = $region56
        $region55: #{tpu_custom_call.1} parent=39 // pred_region
          %283 = dma.done [#allocation9], 16
        $region56: #{tpu_custom_call.1} parent=39 // pred_fallthru
          _
        %284 = sfence
        %p285 = scmp.lt.s32.totalorder %s24, 1
        %s286 = scalar_select %p285, %s24, 1
        %s287 = smul.addr %s286, 8
        %s288 = scalar_lea.vmem %s0, %s287
        %p289 = pneg %p45
        %p290 = pneg %p42
        %s291 = sand.u32 %s58, 1
        %s292 = scalar_lea.sflag [#allocation3], %s291
        %s293 = sand.u32 %s58, 1
        %s294 = smul.addr %s293, 64
        %s295 = scalar_lea.vmem [#allocation2], %s294
        %p296 = pneg %p71
        %p297 = pneg %p68
        %s298 = sand.u32 %s84, 1
        %s299 = scalar_lea.sflag [#allocation6], %s298
        %s300 = sand.u32 %s84, 1
        %s301 = smul.addr %s300, 64
        %s302 = scalar_lea.vmem [#allocation5], %s301
        %p303 = pneg %p97
        %p304 = pneg %p94
        %p305 = pneg %p118
        %p306 = pneg %p115
        %p307 = pneg %p139
        %p308 = pneg %p136
        %p309 = pneg %p165
        %p310 = pneg %p162
        %p311 = scmp.lt.s32.totalorder %s24, 1
        %s312 = scalar_select %p311, %s24, 1
        %s313 = smul.addr %s312, 8
        %s314 = scalar_lea.vmem %s5, %s313
        %p315 = scmp.lt.s32.totalorder %s24, 1
        %s316 = scalar_select %p315, %s24, 1
        %s317 = smul.addr %s316, 8
        %s318 = scalar_lea.vmem %s0, %s317
        %p319 = scmp.lt.s32.totalorder %s24, 1
        %s320 = scalar_select %p319, %s24, 1
        %s321 = smul.addr %s320, 8
        %s322 = scalar_lea.vmem %s5, %s321
        %v323 = vld [vmem:[%s262] sm:$0xff]
        %v324 = vld [vmem:[%s262 + $0x8] sm:$0xff]
        %v325 = vld [vmem:[%s262 + $0x10] sm:$0xff]
        %v326 = vld [vmem:[%s262 + $0x18] sm:$0xff]
        %v327 = vld [vmem:[%s262 + $0x20] sm:$0xff]
        %v328 = vld [vmem:[%s262 + $0x28] sm:$0xff]
        %v329 = vld [vmem:[%s262 + $0x30] sm:$0xff]
        %v330 = vld [vmem:[%s262 + $0x38] sm:$0xff]
        %v331 = vld [vmem:[%s271] sm:$0xff]
        %v332 = vld [vmem:[%s271 + $0x8] sm:$0xff]
        %v333 = vld [vmem:[%s271 + $0x10] sm:$0xff]
        %v334 = vld [vmem:[%s271 + $0x18] sm:$0xff]
        %v335 = vld [vmem:[%s271 + $0x20] sm:$0xff]
        %v336 = vld [vmem:[%s271 + $0x28] sm:$0xff]
        %v337 = vld [vmem:[%s271 + $0x30] sm:$0xff]
        %v338 = vld [vmem:[%s271 + $0x38] sm:$0xff]
        %v339 = vld [vmem:[%s318] sm:$0xff]
        %341 = vset.pattern.permute.xlu0 0
        %342 = vperm.xlu0 %341, %v339
        %v343 = vpop.permute.xlu0 %342
        %v345 = vmul.f32 %v331, %v343
        %v346 = vmul.f32 %v332, %v343
        %v347 = vmul.f32 %v333, %v343
        %v348 = vmul.f32 %v334, %v343
        %v349 = vmul.f32 %v335, %v343
        %v350 = vmul.f32 %v336, %v343
        %v351 = vmul.f32 %v337, %v343
        %v352 = vmul.f32 %v338, %v343
        %v353 = vadd.f32 %v323, %v345
        %v354 = vadd.f32 %v324, %v346
        %v355 = vadd.f32 %v325, %v347
        %v356 = vadd.f32 %v326, %v348
        %v357 = vadd.f32 %v327, %v349
        %v358 = vadd.f32 %v328, %v350
        %v359 = vadd.f32 %v329, %v351
        %v360 = vadd.f32 %v330, %v352
        %s361 = sld [smem:[#allocation7]]
        %v362 = vstv %s361
        %v363 = vmul.f32 %v362, %v353
        %v364 = vmul.f32 %v362, %v354
        %s365 = sld [smem:[#allocation7 + $0x1]]
        %v366 = vstv %s365
        %v367 = vmul.f32 %v366, %v355
        %v368 = vmul.f32 %v366, %v356
        %v369 = vadd.f32 %v363, %v367
        %v370 = vadd.f32 %v364, %v368
        %s371 = sld [smem:[#allocation7 + $0x2]]
        %v372 = vstv %s371
        %v373 = vmul.f32 %v372, %v357
        %v374 = vmul.f32 %v372, %v358
        %v375 = vadd.f32 %v369, %v373
        %v376 = vadd.f32 %v370, %v374
        %s377 = sld [smem:[#allocation7 + $0x3]]
        %v378 = vstv %s377
        %v379 = vmul.f32 %v378, %v359
        %v380 = vmul.f32 %v378, %v360
        %v381 = vadd.f32 %v375, %v379
        %v382 = vadd.f32 %v376, %v380
        %383 = vset.pattern.permute.xlu0 1
        %384 = vperm.xlu0 %383, %v339
        %v385 = vpop.permute.xlu0 %384
        %v387 = vmul.f32 %v385, %v353
        %v388 = vmul.f32 %v385, %v354
        %389 = vset.pattern.permute.xlu0 2
        %390 = vperm.xlu0 %389, %v339
        %v391 = vpop.permute.xlu0 %390
        %v393 = vmul.f32 %v391, %v381
        %v394 = vmul.f32 %v391, %v382
        %v395 = vadd.f32 %v387, %v393
        %v396 = vadd.f32 %v388, %v394
        %s397 = sld [smem:[#allocation8]]
        %v398 = vstv %s397
        %v399 = vmul.f32 %v339, %v398
        %401 = vset.pattern.permute.xlu0 3
        %402 = vperm.xlu0 %401, %v399
        %v403 = vpop.permute.xlu0 %402
        %v405 = vadd.f32 %v395, %v403
        %v406 = vadd.f32 %v396, %v403
        %v407 = vsub.f32 %v405, %v323
        %v408 = vsub.f32 %v406, %v324
        %v409 = vmul.f32 %v407, %v407
        %v410 = vmul.f32 %v408, %v408
        %v411 = vadd.f32 %v409, %v410
        %412 = vadd.xlane.f32.xlu0 %v411
        %v413 = vpop.xlane.xlu0 %412
        %s414 = sld [smem:[#allocation7 + $0x4]]
        %v415 = vstv %s414
        %v416 = vmul.f32 %v415, %v353
        %v417 = vmul.f32 %v415, %v354
        %s418 = sld [smem:[#allocation7 + $0x5]]
        %v419 = vstv %s418
        %v420 = vmul.f32 %v419, %v355
        %v421 = vmul.f32 %v419, %v356
        %v422 = vadd.f32 %v416, %v420
        %v423 = vadd.f32 %v417, %v421
        %s424 = sld [smem:[#allocation7 + $0x6]]
        %v425 = vstv %s424
        %v426 = vmul.f32 %v425, %v357
        %v427 = vmul.f32 %v425, %v358
        %v428 = vadd.f32 %v422, %v426
        %v429 = vadd.f32 %v423, %v427
        %s430 = sld [smem:[#allocation7 + $0x7]]
        %v431 = vstv %s430
        %v432 = vmul.f32 %v431, %v359
        %v433 = vmul.f32 %v431, %v360
        %v434 = vadd.f32 %v428, %v432
        %v435 = vadd.f32 %v429, %v433
        %v436 = vmul.f32 %v385, %v355
        %v437 = vmul.f32 %v385, %v356
        %v438 = vmul.f32 %v391, %v434
        %v439 = vmul.f32 %v391, %v435
        %v440 = vadd.f32 %v436, %v438
        %v441 = vadd.f32 %v437, %v439
        %s442 = sld [smem:[#allocation8 + $0x1]]
        %v443 = vstv %s442
        %v444 = vmul.f32 %v339, %v443
        %446 = vset.pattern.permute.xlu0 3
        %447 = vperm.xlu0 %446, %v444
        %v448 = vpop.permute.xlu0 %447
        %v450 = vadd.f32 %v440, %v448
        %v451 = vadd.f32 %v441, %v448
        %v452 = vsub.f32 %v450, %v325
        %v453 = vsub.f32 %v451, %v326
        %v454 = vmul.f32 %v452, %v452
        %v455 = vmul.f32 %v453, %v453
        %v456 = vadd.f32 %v454, %v455
        %457 = vadd.xlane.f32.xlu0 %v456
        %v458 = vpop.xlane.xlu0 %457
        %v459 = vadd.f32 %v413, %v458
        %s460 = sld [smem:[#allocation7 + $0x8]]
        %v461 = vstv %s460
        %v462 = vmul.f32 %v461, %v353
        %v463 = vmul.f32 %v461, %v354
        %s464 = sld [smem:[#allocation7 + $0x9]]
        %v465 = vstv %s464
        %v466 = vmul.f32 %v465, %v355
        %v467 = vmul.f32 %v465, %v356
        %v468 = vadd.f32 %v462, %v466
        %v469 = vadd.f32 %v463, %v467
        %s470 = sld [smem:[#allocation7 + $0xa]]
        %v471 = vstv %s470
        %v472 = vmul.f32 %v471, %v357
        %v473 = vmul.f32 %v471, %v358
        %v474 = vadd.f32 %v468, %v472
        %v475 = vadd.f32 %v469, %v473
        %s476 = sld [smem:[#allocation7 + $0xb]]
        %v477 = vstv %s476
        %v478 = vmul.f32 %v477, %v359
        %v479 = vmul.f32 %v477, %v360
        %v480 = vadd.f32 %v474, %v478
        %v481 = vadd.f32 %v475, %v479
        %v482 = vmul.f32 %v385, %v357
        %v483 = vmul.f32 %v385, %v358
        %v484 = vmul.f32 %v391, %v480
        %v485 = vmul.f32 %v391, %v481
        %v486 = vadd.f32 %v482, %v484
        %v487 = vadd.f32 %v483, %v485
        %s488 = sld [smem:[#allocation8 + $0x2]]
        %v489 = vstv %s488
        %v490 = vmul.f32 %v339, %v489
        %492 = vset.pattern.permute.xlu0 3
        %493 = vperm.xlu0 %492, %v490
        %v494 = vpop.permute.xlu0 %493
        %v496 = vadd.f32 %v486, %v494
        %v497 = vadd.f32 %v487, %v494
        %v498 = vsub.f32 %v496, %v327
        %v499 = vsub.f32 %v497, %v328
        %v500 = vmul.f32 %v498, %v498
        %v501 = vmul.f32 %v499, %v499
        %v502 = vadd.f32 %v500, %v501
        %503 = vadd.xlane.f32.xlu0 %v502
        %v504 = vpop.xlane.xlu0 %503
        %v505 = vadd.f32 %v459, %v504
        %s506 = sld [smem:[#allocation7 + $0xc]]
        %v507 = vstv %s506
        %v508 = vmul.f32 %v507, %v353
        %v509 = vmul.f32 %v507, %v354
        %s510 = sld [smem:[#allocation7 + $0xd]]
        %v511 = vstv %s510
        %v512 = vmul.f32 %v511, %v355
        %v513 = vmul.f32 %v511, %v356
        %v514 = vadd.f32 %v508, %v512
        %v515 = vadd.f32 %v509, %v513
        %s516 = sld [smem:[#allocation7 + $0xe]]
        %v517 = vstv %s516
        %v518 = vmul.f32 %v517, %v357
        %v519 = vmul.f32 %v517, %v358
        %v520 = vadd.f32 %v514, %v518
        %v521 = vadd.f32 %v515, %v519
        %s522 = sld [smem:[#allocation7 + $0xf]]
        %v523 = vstv %s522
        %v524 = vmul.f32 %v523, %v359
        %v525 = vmul.f32 %v523, %v360
        %v526 = vadd.f32 %v520, %v524
        %v527 = vadd.f32 %v521, %v525
        %v528 = vmul.f32 %v385, %v359
        %v529 = vmul.f32 %v385, %v360
        %v530 = vmul.f32 %v391, %v526
        %v531 = vmul.f32 %v391, %v527
        %v532 = vadd.f32 %v528, %v530
        %v533 = vadd.f32 %v529, %v531
        %s534 = sld [smem:[#allocation8 + $0x3]]
        %v535 = vstv %s534
        %v536 = vmul.f32 %v339, %v535
        %538 = vset.pattern.permute.xlu0 3
        %539 = vperm.xlu0 %538, %v536
        %v540 = vpop.permute.xlu0 %539
        %v542 = vadd.f32 %v532, %v540
        %v543 = vadd.f32 %v533, %v540
        %v544 = vsub.f32 %v542, %v329
        %v545 = vsub.f32 %v543, %v330
        %v546 = vmul.f32 %v544, %v544
        %v547 = vmul.f32 %v545, %v545
        %v548 = vadd.f32 %v546, %v547
        %549 = vadd.xlane.f32.xlu0 %v548
        %v550 = vpop.xlane.xlu0 %549
        %v551 = vadd.f32 %v505, %v550
        %v552 = vmul.f32 %v339, %v551
        %554 = vrot.lane.b32.xlu0 %v552, 124
        %v555 = vpop.permute.xlu0 %554
        %vm557 = vcmask 7168
        %558 = vst.msk [vmem:[%s322] sm:$0xff] %vm557, %v555
        %p559 = scmp.lt.s32.totalorder %s24, 1
        %s560 = scalar_select %p559, %s24, 1
        %s561 = smul.addr %s560, 8
        %s562 = scalar_lea.vmem %s5, %s561
        // Predicated region
        $region57: #{tpu_custom_call.1} parent=39 // pred_check
          %p563 = pneg %p162
        $region58: #{tpu_custom_call.1} parent=39 // pred_check_branch
          %565 = sbr.rel (%p563) target = $region60
        $region59: #{tpu_custom_call.1} parent=39 // pred_region
          _
        $region60: #{tpu_custom_call.1} parent=39 // pred_fallthru
          _
      $region40: #{tpu_custom_call.1} parent=5 // pred_fallthru
        _
      %p566 = scmp.le.s32.totalorder 2, %s19
      // Predicated region
      $region61: #{tpu_custom_call.1} parent=5 // pred_check
        %p567 = pneg %p566
      $region62: #{tpu_custom_call.1} parent=5 // pred_check_branch
        %569 = sbr.rel (%p567) target = $region64
      $region63: #{tpu_custom_call.1} parent=5 // pred_region
        %s570 = ssub.s32 %s19, 2
        // Predicated region
        $region65: #{tpu_custom_call.1} parent=63 // pred_check
          %p571 = pneg %p168
        $region66: #{tpu_custom_call.1} parent=63 // pred_check_branch
          %573 = sbr.rel (%p571) target = $region68
        $region67: #{tpu_custom_call.1} parent=63 // pred_region
          %p574 = scmp.lt.s32.totalorder %s25, 1
          %s575 = scalar_select %p574, %s25, 1
          %s576 = smul.addr %s575, 8
          %s577 = scalar_lea.vmem %s5, %s576
        $region68: #{tpu_custom_call.1} parent=63 // pred_fallthru
          _
      $region64: #{tpu_custom_call.1} parent=5 // pred_fallthru
        _
    $region6: #{tpu_custom_call.1} parent=1 // loop_footer
      %s23 = sadd.s32 1, %s19
    $region7: #{tpu_custom_call.1} parent=1 // loop_footer_branch
      %18 = sbr.rel target = $region3
    $region8: #{tpu_custom_call.1} parent=1 // loop_exit
      _
    %578 = vsyncpa [#allocation3], 1
    %s579 = scalar_lea.sflag [#allocation3], 1
    %580 = vsyncpa %s579, 1
    %581 = vsyncpa [#allocation6], 1
    %s582 = scalar_lea.sflag [#allocation6], 1
    %583 = vsyncpa %s582, 1
    %584 = vsyncpa [#allocation4], 1
    %s585 = scalar_lea.sflag [#allocation4], 1
    %586 = vsyncpa %s585, 1
    %587 = vsyncpa [#allocation9], 1

</llo_original>
